<compile_context>
chip_gen: v5e
topology: v5e:2x2
jax: 0.10.0
libtpu: 0.0.40
codegen_flags: <defaults>
</compile_context>

<pallas_src>
import jax
import jax.numpy as jnp
from jax.experimental import pallas as pl
from jax.experimental.pallas import tpu as pltpu

# Below this size a pallas_call launch is pure overhead vs. the free reshape.
_MIN_KERNEL_BYTES = 256 * 1024
# Split very large copies into a few concurrent DMAs (per-chunk target size).
_CHUNK_TARGET_BYTES = 4 * 1024 * 1024
_MAX_DMA_CHUNKS = 8


def _flatten_view(x):
    """Metadata-only part of Flatten.forward (free: no data movement)."""
    if x.ndim == 1:
        return x[None, :]                  # x.unsqueeze(dim=0)
    return x.reshape(x.shape[0], -1)       # x.reshape(x.size(0), -1)


def _chunk_bounds(rows, n_chunks):
    """Static (start, size) row ranges covering [0, rows) in n_chunks pieces."""
    base, rem = divmod(rows, n_chunks)
    bounds, start = [], 0
    for c in range(n_chunks):
        size = base + (1 if c < rem else 0)
        if size:
            bounds.append((start, size))
        start += size
    return bounds


def _make_dma_copy_kernel(chunk_bounds):
    """Kernel: issue all HBM->HBM DMA chunks, then wait on all of them."""
    def kernel(x_hbm, o_hbm, sems):
        copies = []
        for idx, (start, size) in enumerate(chunk_bounds):
            cp = pltpu.make_async_copy(
                x_hbm.at[pl.ds(start, size), :],
                o_hbm.at[pl.ds(start, size), :],
                sems.at[idx],
            )
            cp.start()
            copies.append(cp)
        for cp in copies:
            cp.wait()
    return kernel


def flatten_materialize_pallas(x, *, chunk_target_bytes=_CHUNK_TARGET_BYTES):
    """Explicitly materializing Flatten: one grid-less pallas_call performing a
    direct HBM->HBM DMA copy of the flattened view (no VMEM staging)."""
    x2d = _flatten_view(x)
    n, d = x2d.shape
    nbytes = n * d * x2d.dtype.itemsize
    n_chunks = int(min(_MAX_DMA_CHUNKS, n, max(1, nbytes // chunk_target_bytes)))
    bounds = _chunk_bounds(n, n_chunks)

    out = pl.pallas_call(
        _make_dma_copy_kernel(bounds),
        out_shape=jax.ShapeDtypeStruct((n, d), x2d.dtype),
        in_specs=[pl.BlockSpec(memory_space=pl.ANY)],
        out_specs=pl.BlockSpec(memory_space=pl.ANY),
        scratch_shapes=[pltpu.SemaphoreType.DMA((len(bounds),))],
        cost_estimate=pl.CostEstimate(
            flops=0, transcendentals=0, bytes_accessed=2 * nbytes),
    )(x2d)
    return out


def flatten_pallas(x, materialize=False):
    """Pallas implementation of Flatten.forward.

    Default: return the metadata-only reshape (flatten is free).
    materialize=True: force an explicit copy via the HBM->HBM DMA kernel,
    unless the tensor is tiny or not 128-divisible (kernel is pure overhead
    there, so the free reshape is returned instead).
    """
    x2d = _flatten_view(x)
    if not materialize:
        return x2d
    nbytes = x2d.size * x2d.dtype.itemsize
    if nbytes < _MIN_KERNEL_BYTES:
        return x2d            # launch overhead dwarfs the copy
    if x2d.size % 128 != 0:
        return x2d            # narrow-lane: free reshape strictly dominates
    return flatten_materialize_pallas(x)


if __name__ == "__main__":
    key = jax.random.PRNGKey(0)
    k1, k2, k3, k4 = jax.random.split(key, 4)

    # 4-D NCHW case: (N, C, H, W) = (2, 4, 16, 16) -> (2, 1024).
    # Default path: metadata-only (no kernel).
    x = jax.random.normal(k1, (2, 4, 16, 16), dtype=jnp.float32)
    ref = x.reshape(2, -1)
    out = jax.block_until_ready(flatten_pallas(x))
    assert out.shape == (2, 4 * 16 * 16), out.shape
    assert out.dtype == x.dtype
    assert jnp.array_equal(out, ref), "4-D flatten (fast path) mismatch"

    # Same small input, forced through the DMA-copy kernel (single DMA).
    outk = jax.block_until_ready(flatten_materialize_pallas(x))
    assert outk.shape == (2, 1024), outk.shape
    assert jnp.array_equal(outk, ref), "4-D flatten (DMA kernel) mismatch"

    # 1-D case: (256,) -> (1, 256).
    v = jax.random.normal(k2, (256,), dtype=jnp.float32)
    out1 = jax.block_until_ready(flatten_pallas(v))
    assert out1.shape == (1, 256), out1.shape
    assert jnp.array_equal(out1, v[None, :]), "1-D unsqueeze mismatch"

    # Non-128-divisible case: (2, 3, 5, 7) -> (2, 105); kernel is skipped
    # even with materialize=True (free reshape dominates a narrow-lane copy).
    w = jax.random.normal(k3, (2, 3, 5, 7), dtype=jnp.float32)
    out2 = jax.block_until_ready(flatten_pallas(w, materialize=True))
    assert out2.shape == (2, 105), out2.shape
    assert jnp.array_equal(out2, w.reshape(2, -1)), "non-aligned flatten mismatch"

    # Larger aligned case: (8, 4, 64, 64) -> (8, 16384), 512 KiB.
    # materialize=True passes the size/alignment policy and hits the kernel;
    # also exercise the multi-chunk DMA path via a smaller per-chunk target.
    y = jax.random.normal(k4, (8, 4, 64, 64), dtype=jnp.float32)
    refy = y.reshape(8, -1)
    out3 = jax.block_until_ready(flatten_pallas(y, materialize=True))
    assert out3.shape == (8, 4 * 64 * 64), out3.shape
    assert jnp.array_equal(out3, refy), "materialized flatten mismatch"
    out4 = jax.block_until_ready(
        flatten_materialize_pallas(y, chunk_target_bytes=128 * 1024))
    assert jnp.array_equal(out4, refy), "multi-chunk DMA flatten mismatch"

    print("KERNEL_OK")
</pallas_src>

<mosaic_0001>
module attributes {stable_mosaic.version = 11 : i64} {
  func.func @kernel(%arg0: memref<2x1024xf32, #tpu.memory_space<any>>, %arg1: memref<2x1024xf32, #tpu.memory_space<any>>, %arg2: memref<1x!tpu.dma_semaphore, #tpu.memory_space<semaphore_mem>>) attributes {dimension_semantics = [], scalar_prefetch = 0 : i64, scratch_operands = 1 : i64, tpu.core_type = #tpu.core_type<tc>} {
    %c0_i32 = arith.constant 0 : i32
    %c0_i32_0 = arith.constant 0 : i32
    %c0_i32_1 = arith.constant 0 : i32
    %0 = tpu.memref_slice %arg0[%c0_i32_0, %c0_i32_1] : memref<2x1024xf32, #tpu.memory_space<any>> -> memref<2x1024xf32, #tpu.memory_space<any>>
    %c0_i32_2 = arith.constant 0 : i32
    %c0_i32_3 = arith.constant 0 : i32
    %1 = tpu.memref_slice %arg1[%c0_i32_2, %c0_i32_3] : memref<2x1024xf32, #tpu.memory_space<any>> -> memref<2x1024xf32, #tpu.memory_space<any>>
    %2 = tpu.memref_slice %arg2[%c0_i32] : memref<1x!tpu.dma_semaphore, #tpu.memory_space<semaphore_mem>> -> memref<1x!tpu.dma_semaphore, #tpu.memory_space<semaphore_mem>>
    %3 = tpu.memref_squeeze %2 : memref<1x!tpu.dma_semaphore, #tpu.memory_space<semaphore_mem>> -> memref<!tpu.dma_semaphore, #tpu.memory_space<semaphore_mem>>
    tpu.enqueue_dma source(%0 : memref<2x1024xf32, #tpu.memory_space<any>>) target(%1 : memref<2x1024xf32, #tpu.memory_space<any>>) target_semaphore(%3 : memref<!tpu.dma_semaphore, #tpu.memory_space<semaphore_mem>>)
    %c0_i32_4 = arith.constant 0 : i32
    %c0_i32_5 = arith.constant 0 : i32
    %c0_i32_6 = arith.constant 0 : i32
    %4 = tpu.memref_slice %arg0[%c0_i32_5, %c0_i32_6] : memref<2x1024xf32, #tpu.memory_space<any>> -> memref<2x1024xf32, #tpu.memory_space<any>>
    %c0_i32_7 = arith.constant 0 : i32
    %c0_i32_8 = arith.constant 0 : i32
    %5 = tpu.memref_slice %arg1[%c0_i32_7, %c0_i32_8] : memref<2x1024xf32, #tpu.memory_space<any>> -> memref<2x1024xf32, #tpu.memory_space<any>>
    %6 = tpu.memref_slice %arg2[%c0_i32_4] : memref<1x!tpu.dma_semaphore, #tpu.memory_space<semaphore_mem>> -> memref<1x!tpu.dma_semaphore, #tpu.memory_space<semaphore_mem>>
    %7 = tpu.memref_squeeze %6 : memref<1x!tpu.dma_semaphore, #tpu.memory_space<semaphore_mem>> -> memref<!tpu.dma_semaphore, #tpu.memory_space<semaphore_mem>>
    tpu.wait_dma2 semaphore(%7 : memref<!tpu.dma_semaphore, #tpu.memory_space<semaphore_mem>>) src(%4 : memref<2x1024xf32, #tpu.memory_space<any>>) dst(%5 : memref<2x1024xf32, #tpu.memory_space<any>>)
    return
  }
}

</mosaic_0001>

<llo_original>
// kernel: tpu_custom_call.1
$region0: #{tpu_custom_call.1}
  #allocation0 [shape = 'u32[]', space=smem, size = 0x4, offset = 0x4, fixed_abs, tag = 'smem constant byte address 0x4 - core index']
  #allocation1 [shape = 'u32[72,128]{1,0:T(1,128)}', space=vmem, size = 0x9000, scoped, tag = 'internal scratch']
  #allocation2 [shape = 's32[1]{0}', space=sflag, size = 0x4, scoped, tag = 'scratch operand']
  #allocation3 [shape = 's32[]', space=sflag, size = 0x4, offset = 0, fixed_abs, tag = 'sflag constant byte address 0x0 - dummy sync flag']
  #allocation4 [shape = 'u32[0]{0}', space=smem, size = 0, offset = 0, fixed_abs, tag = 'smem constant byte address 0x0 - null']
  %s0 = inlined_call_operand.hbm [shape: f32[2,1024], index: 0, kind: input, shape index: {}]
  %s1 = inlined_call_operand.hbm [shape: f32[2,1024], index: 1, kind: output, shape index: {}]
  %s2 = sld [smem:[#allocation0]]
  $region2: #{tpu_custom_call.1} parent=0
    _
  %s4 = ssub.s32 1, %s2
  %s5 = scalar_select 0, %s4, %s2
  %s7 = sshll.u32 1, 14
  %s8 = sxor.u32 4294967295, %s7
  %s10 = sshll.u32 %s0, 4
  %s11 = int_to_ptr.hbm [resolvable:$true] %s10
  %s12 = sshll.u32 %s1, 4
  %s13 = int_to_ptr.hbm [resolvable:$true] %s12
  %16 = dma.general %s11, 256, %s13, [#allocation2], [#allocation3], [#allocation4], 0, 0
  %s17 = smul.u32 2, 1
  %s18 = smul.u32 %s17, 8
  %s19 = sshll.u32 %s18, 4
  %20 = dma.done [#allocation2], %s19
  %21 = vsyncmov [#allocation2]
  %s22 = vpop.sfrf %21
  %p23 = scmp.eq.s32.totalorder %s22, 0
  %p24 = pneg %p23
  %26 = shalt.err (%p24)

</llo_original>
